<compile_context>
chip_gen: v7x
topology: tpu7x:2x2x1
jax: 0.10.0
libtpu: 0.0.40
codegen_flags: <defaults>
</compile_context>

<pallas_src>
import math

import jax
import jax.numpy as jnp
from jax.experimental import pallas as pl
from jax.experimental.pallas import tpu as pltpu


# ---------------------------------------------------------------------------
# Kernels
# ---------------------------------------------------------------------------
# Fast path (small layers): grid (M-tiles, N-tiles), full K per block.
# No accumulator scratch, no K-axis init/finalize.

def _fast_kernel_bias(x_ref, w_ref, b_ref, o_ref):
    acc = jnp.dot(x_ref[...], w_ref[...], preferred_element_type=jnp.float32)
    o_ref[...] = (acc + b_ref[...]).astype(o_ref.dtype)


def _fast_kernel_nobias(x_ref, w_ref, o_ref):
    acc = jnp.dot(x_ref[...], w_ref[...], preferred_element_type=jnp.float32)
    o_ref[...] = acc.astype(o_ref.dtype)


# Tiled path: 3-D grid (M, N, K) with a float32 VMEM accumulator resident
# across the innermost ("arbitrary") K axis.  Weight comes in pre-transposed
# (K, N), so jnp.dot contracts x's last dim with w's first dim -- MXU native.

def _tiled_kernel_bias(x_ref, w_ref, b_ref, o_ref, acc_ref):
    k = pl.program_id(2)

    @pl.when(k == 0)
    def _():
        acc_ref[...] = jnp.zeros_like(acc_ref)

    acc_ref[...] += jnp.dot(x_ref[...], w_ref[...],
                            preferred_element_type=jnp.float32)

    @pl.when(k == pl.num_programs(2) - 1)
    def _():
        o_ref[...] = (acc_ref[...] + b_ref[...]).astype(o_ref.dtype)


def _tiled_kernel_nobias(x_ref, w_ref, o_ref, acc_ref):
    k = pl.program_id(2)

    @pl.when(k == 0)
    def _():
        acc_ref[...] = jnp.zeros_like(acc_ref)

    acc_ref[...] += jnp.dot(x_ref[...], w_ref[...],
                            preferred_element_type=jnp.float32)

    @pl.when(k == pl.num_programs(2) - 1)
    def _():
        o_ref[...] = acc_ref[...].astype(o_ref.dtype)


# ---------------------------------------------------------------------------
# Helpers
# ---------------------------------------------------------------------------

def _round_up(x, m):
    return ((x + m - 1) // m) * m


def _pick_tile(dim, target, align=128, min_tile=256):
    """Return (tile, padded_dim).

    If dim fits in one tile, use the full dim (full-extent block bypasses the
    (8,128) divisibility rule -> no padding at all).  Otherwise only emit
    128-multiple tiles (covers sublane packing for f32/bf16/int8 and lane
    width), preferring one that divides the 128-padded dim.
    """
    if dim <= target:
        return dim, dim
    padded = _round_up(dim, align)
    for t in range(target, min_tile - 1, -align):
        if padded % t == 0:
            return t, padded
    return target, _round_up(dim, target)


def _vmem_capacity_bytes():
    try:
        return int(pltpu.get_tpu_info().vmem_capacity_bytes)
    except Exception:
        return 64 * 1024 * 1024  # conservative: v7x per-TensorCore VMEM


def _generation_tile_defaults(itemsize):
    """(tm, tn, tk) targets per TPU generation."""
    kind = ""
    try:
        kind = jax.devices()[0].device_kind.lower()
    except Exception:
        pass
    if ("v5 lite" in kind) or ("v5e" in kind) or ("v5lite" in kind):
        # v5e roofline ~240 flops/HBM-byte: 512x512 already saturates the MXU;
        # big tk keeps the f32 accumulator RMW off the single vector-store slot.
        return 512, 512, 1024
    # v6e / v7x (and unknown): need high arithmetic intensity -> large square
    # M/N tiles; footprint stays well under the v7x 64 MiB VMEM.
    del itemsize
    return 1024, 1024, 512


# ---------------------------------------------------------------------------
# Wrapper
# ---------------------------------------------------------------------------

def linear_pallas(x, weight, bias=None, *, tm=None, tn=None, tk=None,
                  allow_weight_resident=True):
    """F.linear(x, weight, bias) via tiled Pallas TPU matmul kernels.

    x:      (..., in_features)
    weight: (out_features, in_features)   (PyTorch layout)
    bias:   (out_features,) or None
    """
    out_features, in_features = weight.shape
    orig_shape = x.shape
    assert orig_shape[-1] == in_features

    x2d = x.reshape(-1, in_features)
    M, K, N = x2d.shape[0], in_features, out_features

    out_dtype = x.dtype
    x_bytes = x2d.dtype.itemsize
    w_bytes = weight.dtype.itemsize
    o_bytes = jnp.dtype(out_dtype).itemsize
    has_bias = bias is not None

    cap = _vmem_capacity_bytes()
    d_tm, d_tn, d_tk = _generation_tile_defaults(max(x_bytes, w_bytes))
    if tm is None and tn is None:
        # Aspect-ratio bias: x is re-read N_pad/tn times, w is re-read
        # M_pad/tm times -> grow the tile on the dominant stream's axis.
        if M >= 4 * N and d_tm <= 1024:
            d_tm, d_tn = d_tm * 2, max(256, d_tn // 2)
        elif N >= 4 * M and d_tn <= 1024:
            d_tm, d_tn = max(256, d_tm // 2), d_tn * 2
    tm = d_tm if tm is None else tm
    tn = d_tn if tn is None else tn
    tk = d_tk if tk is None else tk

    # One-time weight transpose to (K, N): RHS is MXU-native (N on lanes).
    w_t = weight.T

    tm, M_pad = _pick_tile(M, tm)
    tn, N_pad = _pick_tile(N, tn)

    b2d = None
    if has_bias:
        b2d = bias.reshape(1, N).astype(jnp.float32)
        if N_pad != N:
            b2d = jnp.pad(b2d, ((0, 0), (0, N_pad - N)))

    grid_m, grid_n = M_pad // tm, N_pad // tn

    # ---------------- weight-resident fast path decision --------------------
    use_fast = False
    fp = 0
    if allow_weight_resident:
        w_total = K * N_pad * w_bytes
        if w_total <= min(16 * 1024 * 1024, cap // 4):
            tn_f = tn
            if grid_m * grid_n == 1 and N_pad >= 256 and N_pad % 256 == 0:
                tn_f = N_pad // 2  # give the 2nd v7x TensorCore some work
            fp_fast = (2 * tm * K * x_bytes          # double-buffered x tiles
                       + 2 * K * tn_f * w_bytes      # weight tiles
                       + 2 * tm * tn_f * o_bytes     # double-buffered out tiles
                       + (2 * tn_f * 4 if has_bias else 0))
            if fp_fast <= cap - 16 * 1024 * 1024:
                use_fast = True
                tn = tn_f
                grid_n = N_pad // tn
                fp = fp_fast

    if use_fast:
        # No K padding needed: full-extent K blocks are always legal.
        x_in = x2d
        if M_pad != M:
            x_in = jnp.pad(x_in, ((0, M_pad - M), (0, 0)))
        w_in = w_t
        if N_pad != N:
            w_in = jnp.pad(w_in, ((0, 0), (0, N_pad - N)))

        in_specs = [pl.BlockSpec((tm, K), lambda i, j: (i, 0)),
                    pl.BlockSpec((K, tn), lambda i, j: (0, j))]
        args = [x_in, w_in]
        if has_bias:
            in_specs.append(pl.BlockSpec((1, tn), lambda i, j: (0, j)))
            args.append(b2d)
            kernel = _fast_kernel_bias
        else:
            kernel = _fast_kernel_nobias

        grid = (grid_m, grid_n)
        out_specs = pl.BlockSpec((tm, tn), lambda i, j: (i, j))
        scratch = []
        dim_sems = ("parallel", "parallel")
        flops = 2 * M_pad * K * N_pad + (M_pad * N_pad if has_bias else 0)
        bytes_accessed = (M_pad * K * x_bytes * grid_n
                          + K * N_pad * w_bytes * (grid_m if grid_n > 1 else 1)
                          + (N_pad * 4 if has_bias else 0)
                          + M_pad * N_pad * o_bytes)
    else:
        tk, K_pad = _pick_tile(K, tk)

        x_in = x2d
        if (M_pad, K_pad) != (M, K):
            # TODO(synk): for very large activations, mask the last M/K tile
            # in-kernel instead of this extra XLA pad pass over x.
            x_in = jnp.pad(x_in, ((0, M_pad - M), (0, K_pad - K)))
        w_in = w_t
        if (K_pad, N_pad) != (K, N):
            w_in = jnp.pad(w_in, ((0, K_pad - K), (0, N_pad - N)))

        in_specs = [pl.BlockSpec((tm, tk), lambda i, j, k: (i, k)),
                    pl.BlockSpec((tk, tn), lambda i, j, k: (k, j))]
        args = [x_in, w_in]
        if has_bias:
            in_specs.append(pl.BlockSpec((1, tn), lambda i, j, k: (0, j)))
            args.append(b2d)
            kernel = _tiled_kernel_bias
        else:
            kernel = _tiled_kernel_nobias

        grid = (grid_m, grid_n, K_pad // tk)
        out_specs = pl.BlockSpec((tm, tn), lambda i, j, k: (i, j))
        scratch = [pltpu.VMEM((tm, tn), jnp.float32)]
        dim_sems = ("parallel", "parallel", "arbitrary")
        fp = (2 * tm * tk * x_bytes
              + 2 * tk * tn * w_bytes
              + 2 * tm * tn * o_bytes
              + tm * tn * 4
              + (2 * tn * 4 if has_bias else 0))
        flops = 2 * M_pad * K_pad * N_pad + (M_pad * N_pad if has_bias else 0)
        bytes_accessed = (M_pad * K_pad * x_bytes * grid_n
                          + K_pad * N_pad * w_bytes * grid_m
                          + (N_pad * 4 * grid_m if has_bias else 0)
                          + M_pad * N_pad * o_bytes)

    # VMEM limit: actual footprint (+ headroom), clamped to device capacity
    # minus 8 MiB -- never exceeds v7x's 64 MiB per-TC VMEM.
    vmem_limit = int(min(cap - 8 * 1024 * 1024,
                         max(fp + 4 * 1024 * 1024, 32 * 1024 * 1024)))

    out = pl.pallas_call(
        kernel,
        out_shape=jax.ShapeDtypeStruct((M_pad, N_pad), out_dtype),
        grid_spec=pltpu.PrefetchScalarGridSpec(
            num_scalar_prefetch=0,
            grid=grid,
            in_specs=in_specs,
            out_specs=out_specs,
            scratch_shapes=scratch,
        ),
        compiler_params=pltpu.CompilerParams(
            dimension_semantics=dim_sems,
            vmem_limit_bytes=vmem_limit,
        ),
        cost_estimate=pl.CostEstimate(
            flops=int(flops),
            transcendentals=0,
            bytes_accessed=int(bytes_accessed),
        ),
    )(*args)

    out = out[:M, :N]
    return out.reshape(*orig_shape[:-1], out_features)


# ---------------------------------------------------------------------------
# Init (matches lecun_normal_: trunc_normal(std=1, a=-2, b=2) * sqrt(scale/fan_in))
# ---------------------------------------------------------------------------

def lecun_normal_init(key, out_features, in_features, scale=1.0, dtype=jnp.float32):
    w = jax.random.truncated_normal(
        key, -2.0, 2.0, (out_features, in_features), dtype=dtype
    )
    return w * jnp.asarray(math.sqrt(scale / in_features), dtype=dtype)


if __name__ == "__main__":
    key = jax.random.PRNGKey(0)
    k_x, k_w, k_x2, k_w2 = jax.random.split(key, 4)

    # --- small shapes consistent with the module (fast / weight-resident path)
    batch, seq, in_features, out_features = 2, 8, 32, 64
    x = jax.random.normal(k_x, (batch, seq, in_features), dtype=jnp.float32)
    weight = lecun_normal_init(k_w, out_features, in_features, scale=1.0)
    bias = jnp.zeros((out_features,), dtype=jnp.float32)

    y = jax.block_until_ready(linear_pallas(x, weight, bias))
    y_ref = x @ weight.T + bias
    assert y.shape == (batch, seq, out_features)
    assert jnp.allclose(y, y_ref, atol=1e-4, rtol=1e-4)

    # bias=False path
    y_nb = jax.block_until_ready(linear_pallas(x, weight, None))
    assert jnp.allclose(y_nb, x @ weight.T, atol=1e-4, rtol=1e-4)

    # --- exercise the 3-D tiled path (f32 accumulator across K) with small
    #     tile overrides so the test stays tiny but covers init/RMW/finalize.
    M2, K2, N2 = 256, 384, 256
    x2 = jax.random.normal(k_x2, (M2, K2), dtype=jnp.float32)
    w2 = lecun_normal_init(k_w2, N2, K2, scale=1.0)
    b2 = 0.1 * jnp.ones((N2,), dtype=jnp.float32)
    y2 = jax.block_until_ready(
        linear_pallas(x2, w2, b2, tm=128, tn=128, tk=128,
                      allow_weight_resident=False))
    y2_ref = x2 @ w2.T + b2
    assert y2.shape == (M2, N2)
    assert jnp.allclose(y2, y2_ref, atol=1e-3, rtol=1e-3)

    print("KERNEL_OK")
</pallas_src>

<mosaic_0001>
module attributes {stable_mosaic.version = 11 : i64} {
  func.func @_fast_kernel_bias(%arg0: i32, %arg1: i32, %arg2: memref<16x32xf32, #tpu.memory_space<vmem>>, %arg3: memref<32x64xf32, #tpu.memory_space<vmem>>, %arg4: memref<1x64xf32, #tpu.memory_space<vmem>>, %arg5: memref<16x64xf32, #tpu.memory_space<vmem>>) attributes {dimension_semantics = [#tpu.dimension_semantics<parallel>, #tpu.dimension_semantics<parallel>], iteration_bounds = array<i64: 1, 1>, scalar_prefetch = 0 : i64, scratch_operands = 0 : i64, tpu.core_type = #tpu.core_type<tc>, window_params = [{transform_indices = @transform_0, window_bounds = array<i64: 16, 32>}, {transform_indices = @transform_1, window_bounds = array<i64: 32, 64>}, {transform_indices = @transform_2, window_bounds = array<i64: 1, 64>}, {transform_indices = @transform_3, window_bounds = array<i64: 16, 64>}]} {
    %c0 = arith.constant 0 : index
    %c0_0 = arith.constant 0 : index
    %0 = vector.load %arg2[%c0, %c0_0] : memref<16x32xf32, #tpu.memory_space<vmem>>, vector<16x32xf32>
    %c0_1 = arith.constant 0 : index
    %c0_2 = arith.constant 0 : index
    %1 = vector.load %arg3[%c0_1, %c0_2] : memref<32x64xf32, #tpu.memory_space<vmem>>, vector<32x64xf32>
    %cst = arith.constant dense<0.000000e+00> : vector<16x64xf32>
    %2 = tpu.matmul %0, %1, %cst {dimension_numbers = #tpu.dot_dimension_numbers<[1], [0], [0], [1], [0, 0, 1, 1], [], []>} : vector<16x32xf32>, vector<32x64xf32>, vector<16x64xf32> -> vector<16x64xf32>
    %c0_3 = arith.constant 0 : index
    %c0_4 = arith.constant 0 : index
    %3 = vector.load %arg4[%c0_3, %c0_4] : memref<1x64xf32, #tpu.memory_space<vmem>>, vector<1x64xf32>
    %4 = vector.broadcast %3 : vector<1x64xf32> to vector<16x64xf32>
    %5 = arith.addf %2, %4 : vector<16x64xf32>
    %c0_5 = arith.constant 0 : index
    %c0_6 = arith.constant 0 : index
    %6 = vector.load %arg5[%c0_5, %c0_6] : memref<16x64xf32, #tpu.memory_space<vmem>>, vector<16x64xf32>
    tpu.vector_store %arg5[%c0_5, %c0_6], %5 {strides = array<i32>} : memref<16x64xf32, #tpu.memory_space<vmem>>, vector<16x64xf32>,
    return
  }
  func.func @transform_0(%arg0: i32, %arg1: i32) -> (i32, i32) {
    %c0_i32 = arith.constant 0 : i32
    %c0_i32_0 = arith.constant 0 : i32
    return %arg0, %c0_i32 : i32, i32
  }
  func.func @transform_1(%arg0: i32, %arg1: i32) -> (i32, i32) {
    %c0_i32 = arith.constant 0 : i32
    %c0_i32_0 = arith.constant 0 : i32
    return %c0_i32, %arg1 : i32, i32
  }
  func.func @transform_2(%arg0: i32, %arg1: i32) -> (i32, i32) {
    %c0_i32 = arith.constant 0 : i32
    %c0_i32_0 = arith.constant 0 : i32
    return %c0_i32, %arg1 : i32, i32
  }
  func.func @transform_3(%arg0: i32, %arg1: i32) -> (i32, i32) {
    %c0_i32 = arith.constant 0 : i32
    return %arg0, %arg1 : i32, i32
  }
}

</mosaic_0001>

<llo_original>
// kernel: tpu_custom_call.1
$region0: #{tpu_custom_call.1}
  #allocation0 [shape = 'u32[]', space=smem, size = 0x4, offset = 0x4, fixed_abs, tag = 'smem constant byte address 0x4 - core index']
  #allocation1 [shape = 'u32[144,128]{1,0:T(1,128)}', space=vmem, size = 0x12000, scoped, tag = 'internal scratch']
  %s0 = inlined_call_operand.hbm [shape: f32[16,32], index: 0, kind: input, shape index: {}]
  %s1 = inlined_call_operand.hbm [shape: f32[32,64], index: 1, kind: input, shape index: {}]
  %s2 = inlined_call_operand.vmem [shape: f32[1,64], index: 2, kind: input, shape index: {}]
  %s3 = inlined_call_operand.hbm [shape: f32[16,64], index: 3, kind: output, shape index: {}]
  %s4 = sld [smem:[#allocation0]]
  $region30: #{tpu_custom_call.1} parent=0
    _
  %s6 = ssub.s32 1, %s4
  %s7 = scalar_select 0, %s6, %s4
  $region1: #{tpu_custom_call.1} parent=0
    #allocation2 [shape = 'u8[8192]{0}', space=vmem, size = 0x2000, scoped, tag = 'input window, operand 0, single buffered']
    #allocation3 [shape = 's32[1]{0}', space=sflag, size = 0x4, scoped, tag = 'scoped memory for tpu_custom_call.1']
    #allocation4 [shape = 's32[1]{0}', space=sflag, size = 0x4, scoped, tag = 'scoped memory for tpu_custom_call.1']
    #allocation5 [shape = 'u8[16384]{0}', space=vmem, size = 0x4000, scoped, tag = 'input window, operand 1, single buffered']
    #allocation6 [shape = 's32[1]{0}', space=sflag, size = 0x4, scoped, tag = 'scoped memory for tpu_custom_call.1']
    #allocation7 [shape = 'u8[8192]{0}', space=vmem, size = 0x2000, scoped, tag = 'output window, operand 0, single buffered']
    %8 = vsyncpa [#allocation3], 0
    %9 = vsyncpa [#allocation6], 0
    %10 = vsyncpa [#allocation4], 0
    // Predicated region
    $region2: #{tpu_custom_call.1} parent=1 // pred_check
      _
    $region3: #{tpu_custom_call.1} parent=1 // pred_check_branch
      %12 = sbr.rel (0) target = $region5
    $region4: #{tpu_custom_call.1} parent=1 // pred_region
      %s14 = ssub.s32 256, 256
      %15 = vsyncadd [#allocation3], %s14
      %s16 = sshll.u32 [#allocation2], 4
      %s17 = int_to_ptr.vmem [resolvable:$true] %s16
      %22 = dma.hbm_to_vmem [thread:$0]  %s0, 256, %s17, [#allocation3], 128, 128, 8
    $region5: #{tpu_custom_call.1} parent=1 // pred_fallthru
      _
    // Predicated region
    $region6: #{tpu_custom_call.1} parent=1 // pred_check
      _
    $region7: #{tpu_custom_call.1} parent=1 // pred_check_branch
      %24 = sbr.rel (0) target = $region9
    $region8: #{tpu_custom_call.1} parent=1 // pred_region
      %s26 = ssub.s32 512, 512
      %27 = vsyncadd [#allocation6], %s26
      %s28 = sshll.u32 [#allocation5], 4
      %s29 = int_to_ptr.vmem [resolvable:$true] %s28
      %34 = dma.hbm_to_vmem [thread:$0]  %s1, 512, %s29, [#allocation6], 128, 128, 8
    $region9: #{tpu_custom_call.1} parent=1 // pred_fallthru
      _
    // Predicated region
    $region10: #{tpu_custom_call.1} parent=1 // pred_check
      _
    $region11: #{tpu_custom_call.1} parent=1 // pred_check_branch
      %36 = sbr.rel (0) target = $region13
    $region12: #{tpu_custom_call.1} parent=1 // pred_region
      _
    $region13: #{tpu_custom_call.1} parent=1 // pred_fallthru
      _
    // Predicated region
    $region14: #{tpu_custom_call.1} parent=1 // pred_check
      _
    $region15: #{tpu_custom_call.1} parent=1 // pred_check_branch
      %38 = sbr.rel (0) target = $region17
    $region16: #{tpu_custom_call.1} parent=1 // pred_region
      %39 = dma.done [#allocation3], 256
    $region17: #{tpu_custom_call.1} parent=1 // pred_fallthru
      _
    // Predicated region
    $region18: #{tpu_custom_call.1} parent=1 // pred_check
      _
    $region19: #{tpu_custom_call.1} parent=1 // pred_check_branch
      %41 = sbr.rel (0) target = $region21
    $region20: #{tpu_custom_call.1} parent=1 // pred_region
      %42 = dma.done [#allocation6], 512
    $region21: #{tpu_custom_call.1} parent=1 // pred_fallthru
      _
    %v43 = vld [vmem:[#allocation2] sm:$0xff]
    %v44 = vld [vmem:[#allocation2 + $0x8] sm:$0xff]
    %v45 = vld [vmem:[#allocation5] sm:$0xff]
    %v46 = vld [vmem:[#allocation5 + $0x8] sm:$0xff]
    %v47 = vld [vmem:[#allocation5 + $0x10] sm:$0xff]
    %v48 = vld [vmem:[#allocation5 + $0x18] sm:$0xff]
    %v49 = vld [vmem:[%s2] sm:$0x1]
    %v51 = vlaneseq
    %v52 = vshrl.u32 %v51, 7
    %v53 = vsub.s32 0, %v52
    %v54 = vrot.slane %v49, %v53
    %vm56 = vcmask 261120
    %v58 = vsel %vm56, %v43, 0
    %v61 = vsel %vm56, %v44, 0
    %63 = vmatprep.subr.mxu0 0.0
    %64 = vmatpush1.msra.mxu0 %v45
    %65 = vmatprep.subr.mxu0 0.0
    %66 = vmatpush1.msra.mxu0 %v46
    %67 = vmatprep.subr.mxu0 0.0
    %68 = vmatpush1.msra.mxu0 %v47
    %69 = vmatprep.subr.mxu0 0.0
    %70 = vmatpush1.msra.mxu0 %v48
    %71 = vmatprep.subr.mxu0 0.0
    %72 = vmatpush1.msra.mxu0 0.0
    %73 = vmatprep.subr.mxu0 0.0
    %74 = vmatpush1.msra.mxu0 0.0
    %75 = vmatprep.subr.mxu0 0.0
    %76 = vmatpush1.msra.mxu0 0.0
    %77 = vmatprep.subr.mxu0 0.0
    %78 = vmatpush1.msra.mxu0 0.0
    %79 = vmatprep.subr.mxu0 0.0
    %80 = vmatpush1.msra.mxu0 0.0
    %81 = vmatprep.subr.mxu0 0.0
    %82 = vmatpush1.msra.mxu0 0.0
    %83 = vmatprep.subr.mxu0 0.0
    %84 = vmatpush1.msra.mxu0 0.0
    %85 = vmatprep.subr.mxu0 0.0
    %86 = vmatpush1.msra.mxu0 0.0
    %87 = vmatprep.subr.mxu0 0.0
    %88 = vmatpush1.msra.mxu0 0.0
    %89 = vmatprep.subr.mxu0 0.0
    %90 = vmatpush1.msra.mxu0 0.0
    %91 = vmatprep.subr.mxu0 0.0
    %92 = vmatpush1.msra.mxu0 0.0
    %93 = vmatprep.subr.mxu0 0.0
    %94 = vmatpush1.msra.mxu0 0.0
    %95 = vmatprep.subr.mxu0 0.0
    %96 = vmatpush1.msra.mxu0 0.0
    %97 = vmatprep.subr.mxu0 0.0
    %98 = vmatpush1.msra.mxu0 0.0
    %99 = vmatprep.subr.mxu0 0.0
    %100 = vmatpush1.msra.mxu0 0.0
    %101 = vmatprep.subr.mxu0 0.0
    %102 = vmatpush1.msra.mxu0 0.0
    %103 = vmatprep.subr.mxu0 0.0
    %104 = vmatpush1.msra.mxu0 0.0
    %105 = vmatprep.subr.mxu0 0.0
    %106 = vmatpush1.msra.mxu0 0.0
    %107 = vmatprep.subr.mxu0 0.0
    %108 = vmatpush1.msra.mxu0 0.0
    %109 = vmatprep.subr.mxu0 0.0
    %110 = vmatpush1.msra.mxu0 0.0
    %111 = vmatprep.subr.mxu0 0.0
    %112 = vmatpush1.msra.mxu0 0.0
    %113 = vmatprep.subr.mxu0 0.0
    %114 = vmatpush1.msra.mxu0 0.0
    %115 = vmatprep.subr.mxu0 0.0
    %116 = vmatpush1.msra.mxu0 0.0
    %117 = vmatprep.subr.mxu0 0.0
    %118 = vmatpush1.msra.mxu0 0.0
    %119 = vmatprep.subr.mxu0 0.0
    %120 = vmatpush1.msra.mxu0 0.0
    %121 = vmatprep.subr.mxu0 0.0
    %122 = vmatpush1.msra.mxu0 0.0
    %123 = vmatprep.subr.mxu0 0.0
    %124 = vmatpush1.msra.mxu0 0.0
    %125 = vmatprep.subr.mxu0 0.0
    %126 = vmatpush1.msra.mxu0 0.0
    %127 = vmatprep.mubr.f32.mxu0 0.0
    %128 = vmatmul.mubr.f32.gmra.mrb[0].mxu0 %v58
    %v129 = vpop.f32.mrb[0].mxu0
    %v130 = vadd.f32 %v54, %v129
    %v131 = vpop.f32.mrb[0].mxu0
    %132 = vmatprep.mubr.f32.mxu0 0.0
    %133 = vmatmul.mubr.f32.gmra.mrb[0].mxu0 %v61
    %v134 = vpop.f32.mrb[0].mxu0
    %v135 = vadd.f32 %v54, %v134
    %v136 = vpop.f32.mrb[0].mxu0
    %137 = vdwg.mxu0
    %vm138 = vcmask 523264
    %139 = vst.msk [vmem:[#allocation7] sm:$0xff] %vm138, %v130
    %140 = vst.msk [vmem:[#allocation7 + $0x8] sm:$0xff] %vm138, %v135
    // Predicated region
    $region22: #{tpu_custom_call.1} parent=1 // pred_check
      _
    $region23: #{tpu_custom_call.1} parent=1 // pred_check_branch
      %142 = sbr.rel (0) target = $region25
    $region24: #{tpu_custom_call.1} parent=1 // pred_region
      %s144 = ssub.s32 256, 256
      %145 = vsyncadd [#allocation4], %s144
      %s146 = sshll.u32 [#allocation7], 4
      %s147 = int_to_ptr.vmem [resolvable:$true] %s146
      %152 = dma.vmem_to_hbm [thread:$0]  %s147, 256, %s3, [#allocation4], 128, 128, 8
    $region25: #{tpu_custom_call.1} parent=1 // pred_fallthru
      _
    // Predicated region
    $region26: #{tpu_custom_call.1} parent=1 // pred_check
      _
    $region27: #{tpu_custom_call.1} parent=1 // pred_check_branch
      %154 = sbr.rel (0) target = $region29
    $region28: #{tpu_custom_call.1} parent=1 // pred_region
      %155 = dma.done [#allocation4], 256
    $region29: #{tpu_custom_call.1} parent=1 // pred_fallthru
      _
    %156 = vsyncpa [#allocation3], 1
    %157 = vsyncpa [#allocation6], 1
    %158 = vsyncpa [#allocation4], 1

</llo_original>
